<compile_context>
chip_gen: v5e
topology: v5e:2x2
jax: 0.10.0
libtpu: 0.0.40
codegen_flags: <defaults>
</compile_context>

<pallas_src>
import jax
import jax.numpy as jnp
from jax import lax
from jax.experimental import pallas as pl
from jax.experimental.pallas import tpu as pltpu


def _round_up(x, m):
    return ((x + m - 1) // m) * m


def _largest_divisor_leq(n, cap):
    for d in range(min(cap, n), 0, -1):
        if n % d == 0:
            return d
    return 1


def _make_fused_kernel(c_out, n_sub):
    """Fused conv + NCHW->NHWC: output block is (n_sub, TN, C_out)."""

    def kernel(wt_ref, b_ref, x_ref, o_ref):
        # wt_ref: (C_in, C_out_pad) f32 VMEM, resident; b_ref: (1, C_out_pad) f32 VMEM
        # x_ref : (n_sub, C_in, TN)  -- channels on sublanes, spatial on lanes
        # o_ref : (n_sub, TN, C_out) -- spatial on sublanes (NHWC orientation)
        wt = wt_ref[...]
        b = b_ref[...]
        for nb in range(n_sub):
            x = x_ref[nb].astype(jnp.float32)            # (C_in, TN)
            # Contract C_in (dim 0 of both operands): the MXU consumes the
            # channel-major tile and emits (TN, C_out_pad) already transposed,
            # so neither an in-kernel XLU transpose nor a post-kernel XLA
            # transpose is needed.  Hides under the DMA for realistic C_in.
            y = lax.dot_general(x, wt, (((0,), (0,)), ((), ())),
                                preferred_element_type=jnp.float32)
            y = y + b                                    # (TN, C_out_pad)
            o_ref[nb] = y[:, :c_out].astype(o_ref.dtype)

    return kernel


def _make_unfused_kernel(c_out, c_in, n_sub, use_mxu):
    """Baseline (lane-dense output (n_sub, C_out, TN)); XLA transposes afterwards."""

    def kernel(w_ref, b_ref, x_ref, o_ref):
        # w_ref: (C_out, C_in) f32 VMEM, resident; b_ref: (C_out, 1) f32 VMEM
        w = w_ref[...]
        b = b_ref[...]
        for nb in range(n_sub):
            x = x_ref[nb].astype(jnp.float32)            # (C_in, TN)
            if use_mxu:
                acc = jnp.dot(w, x, preferred_element_type=jnp.float32)
            else:
                # Restructured VPU path: loop over C_in only, broadcast FMAs over the
                # full (C_out, TN) tile, single unmasked lane-dense store.
                acc = x[0:1, :] * w[:, 0:1]
                for c in range(1, c_in):
                    acc = acc + x[c:c + 1, :] * w[:, c:c + 1]
            o_ref[nb] = (acc + b).astype(o_ref.dtype)

    return kernel


def class_head_forward(x_nchw, weight, bias, num_anchors, *,
                       hw_tile=8192, fuse_transpose=True, mxu_min_cin=16,
                       vmem_budget_bytes=20 << 20):
    """x_nchw: (N, C_in, H, W); weight: (C_out, C_in) (1x1 kernel dims squeezed);
    bias: (C_out,).  Returns (N, H*W*num_anchors, 2)."""
    N, C_in, H, W = x_nchw.shape
    C_out = weight.shape[0]
    assert C_out == num_anchors * 2
    HW = H * W

    # Channels-as-sublanes / spatial-as-lanes: NCHW -> (N, C_in, H*W) is a pure
    # reshape; the big input never pays an HBM transpose.
    x3 = x_nchw.reshape(N, C_in, HW)

    itemsize = jnp.dtype(x_nchw.dtype).itemsize
    # Conservative per-spatial-element VMEM bytes for one double-buffered in+out block
    # pair (the narrow (TN, C_out) output tile pads to 128 lanes in VMEM).
    per_lane = 2 * (_round_up(C_in, 8) + 128) * itemsize
    tn_cap = max(128, (vmem_budget_bytes // per_lane) // 128 * 128)
    tn = min(_round_up(hw_tile, 128), _round_up(HW, 128), tn_cap)
    hw_steps = pl.cdiv(HW, tn)            # ragged tail: Pallas masks OOB writes (no jnp.pad)

    # Tiny feature maps: fold several images per grid step to amortize the ~0.35us/step
    # overhead, but keep >= 2 grid steps so both v7x TensorCores get work.
    if hw_steps == 1 and N > 2:
        n_cap = min(N // 2, max(1, vmem_budget_bytes // (per_lane * tn)))
        n_sub = _largest_divisor_leq(N, n_cap)
    else:
        n_sub = 1
    grid = (pl.cdiv(N, n_sub), hw_steps)

    w32 = weight.astype(jnp.float32)
    b32 = bias.astype(jnp.float32)
    x_spec = pl.BlockSpec((n_sub, C_in, tn), lambda n, j: (n, 0, j))

    if fuse_transpose:
        c_out_pad = _round_up(C_out, 8)
        wt = jnp.zeros((C_in, c_out_pad), jnp.float32).at[:, :C_out].set(w32.T)
        bt = jnp.zeros((1, c_out_pad), jnp.float32).at[:, :C_out].set(b32[None, :])
        kernel = _make_fused_kernel(C_out, n_sub)
        w_spec = pl.BlockSpec((C_in, c_out_pad), lambda n, j: (0, 0))     # resident
        b_spec = pl.BlockSpec((1, c_out_pad), lambda n, j: (0, 0))        # resident
        out_shape = jax.ShapeDtypeStruct((N, HW, C_out), x_nchw.dtype)
        out_spec = pl.BlockSpec((n_sub, tn, C_out), lambda n, j: (n, 0, j))
        args = (wt, bt, x3)
    else:
        kernel = _make_unfused_kernel(C_out, C_in, n_sub, C_in >= mxu_min_cin)
        w_spec = pl.BlockSpec((C_out, C_in), lambda n, j: (0, 0))         # resident
        b_spec = pl.BlockSpec((C_out, 1), lambda n, j: (0, 0))            # resident
        out_shape = jax.ShapeDtypeStruct((N, C_out, HW), x_nchw.dtype)
        out_spec = pl.BlockSpec((n_sub, C_out, tn), lambda n, j: (n, 0, j))
        args = (w32, b32.reshape(C_out, 1), x3)

    out = pl.pallas_call(
        kernel,
        out_shape=out_shape,
        grid_spec=pltpu.PrefetchScalarGridSpec(
            num_scalar_prefetch=0,
            grid=grid,
            in_specs=[w_spec, b_spec, x_spec],
            out_specs=out_spec),
        compiler_params=pltpu.CompilerParams(
            dimension_semantics=("parallel", "parallel")),
    )(*args)

    if fuse_transpose:
        # (N, HW, C_out) -> (N, HW*A, 2) is a free reshape (no data movement).
        return out.reshape(N, HW * num_anchors, 2)
    # Baseline path keeps the XLA (0,2,1) transpose HBM round-trip (A/B reference only).
    return jnp.transpose(out, (0, 2, 1)).reshape(N, HW * num_anchors, 2)


if __name__ == "__main__":
    # Small shapes consistent with the module: ClassHead(input_channels=4, num_anchors=3)
    N, C_in, H, W = 2, 4, 16, 16
    num_anchors = 3
    C_out = num_anchors * 2

    key = jax.random.PRNGKey(0)
    kx, kw, kb = jax.random.split(key, 3)
    x = jax.random.normal(kx, (N, C_in, H, W), dtype=jnp.float32)
    weight = jax.random.normal(kw, (C_out, C_in), dtype=jnp.float32) * 0.1
    bias = jax.random.normal(kb, (C_out,), dtype=jnp.float32) * 0.1

    try:
        out = jax.block_until_ready(
            class_head_forward(x, weight, bias, num_anchors, fuse_transpose=True))
    except Exception:
        # Safety net: fall back to the lane-dense-output + XLA-transpose baseline if
        # the fused narrow-lane store path is unsupported by the local Mosaic build.
        out = jax.block_until_ready(
            class_head_forward(x, weight, bias, num_anchors, fuse_transpose=False))

    # Reference check (pure JAX, mirrors the PyTorch forward exactly).
    ref = jnp.einsum("nchw,oc->nohw", x, weight) + bias[None, :, None, None]
    ref = jnp.transpose(ref, (0, 2, 3, 1)).reshape(N, -1, 2)
    assert out.shape == (N, H * W * num_anchors, 2), out.shape
    assert jnp.allclose(out, ref, atol=1e-4, rtol=1e-4), float(jnp.max(jnp.abs(out - ref)))

    print("KERNEL_OK")
</pallas_src>

<mosaic_0001>
module attributes {stable_mosaic.version = 11 : i64} {
  func.func @kernel(%arg0: i32, %arg1: i32, %arg2: memref<4x8xf32, #tpu.memory_space<vmem>>, %arg3: memref<1x8xf32, #tpu.memory_space<vmem>>, %arg4: memref<1x4x256xf32, #tpu.memory_space<vmem>>, %arg5: memref<1x256x6xf32, #tpu.memory_space<vmem>>) attributes {dimension_semantics = [#tpu.dimension_semantics<parallel>, #tpu.dimension_semantics<parallel>], iteration_bounds = array<i64: 2, 1>, scalar_prefetch = 0 : i64, scratch_operands = 0 : i64, tpu.core_type = #tpu.core_type<tc>, window_params = [{pipeline_mode = #tpu.pipeline_mode<synchronous>, transform_indices = @transform_0, window_bounds = array<i64: 4, 8>}, {pipeline_mode = #tpu.pipeline_mode<synchronous>, transform_indices = @transform_1, window_bounds = array<i64: 1, 8>}, {transform_indices = @transform_2, window_bounds = array<i64: 1, 4, 256>}, {transform_indices = @transform_3, window_bounds = array<i64: 1, 256, 6>}]} {
    %c0 = arith.constant 0 : index
    %c0_0 = arith.constant 0 : index
    %0 = vector.load %arg2[%c0, %c0_0] : memref<4x8xf32, #tpu.memory_space<vmem>>, vector<4x8xf32>
    %c0_1 = arith.constant 0 : index
    %c0_2 = arith.constant 0 : index
    %1 = vector.load %arg3[%c0_1, %c0_2] : memref<1x8xf32, #tpu.memory_space<vmem>>, vector<1x8xf32>
    %c0_3 = arith.constant 0 : index
    %c0_4 = arith.constant 0 : index
    %c0_5 = arith.constant 0 : index
    %2 = vector.load %arg4[%c0_3, %c0_4, %c0_5] : memref<1x4x256xf32, #tpu.memory_space<vmem>>, vector<1x4x256xf32>
    %3 = vector.shape_cast %2 : vector<1x4x256xf32> to vector<4x256xf32>
    %cst = arith.constant dense<0.000000e+00> : vector<256x8xf32>
    %4 = tpu.matmul %3, %0, %cst {dimension_numbers = #tpu.dot_dimension_numbers<[0], [0], [1], [1], [0, 1, 1, 1], [], []>} : vector<4x256xf32>, vector<4x8xf32>, vector<256x8xf32> -> vector<256x8xf32>
    %5 = vector.broadcast %1 : vector<1x8xf32> to vector<256x8xf32>
    %6 = arith.addf %4, %5 : vector<256x8xf32>
    %7 = vector.extract_strided_slice %6 {offsets = [0, 0], sizes = [256, 6], strides = [1, 1]} : vector<256x8xf32> to vector<256x6xf32>
    %c0_6 = arith.constant 0 : index
    %c0_7 = arith.constant 0 : index
    %c0_8 = arith.constant 0 : index
    %8 = vector.load %arg5[%c0_6, %c0_7, %c0_8] : memref<1x256x6xf32, #tpu.memory_space<vmem>>, vector<1x256x6xf32>
    %9 = vector.shape_cast %8 : vector<1x256x6xf32> to vector<256x6xf32>
    %10 = vector.shape_cast %7 : vector<256x6xf32> to vector<1x256x6xf32>
    tpu.vector_store %arg5[%c0_6, %c0_7, %c0_8], %10 {strides = array<i32>} : memref<1x256x6xf32, #tpu.memory_space<vmem>>, vector<1x256x6xf32>,
    return
  }
  func.func @transform_0(%arg0: i32, %arg1: i32) -> (i32, i32) {
    %c0_i32 = arith.constant 0 : i32
    %c0_i32_0 = arith.constant 0 : i32
    %c0_i32_1 = arith.constant 0 : i32
    return %c0_i32, %c0_i32_0 : i32, i32
  }
  func.func @transform_1(%arg0: i32, %arg1: i32) -> (i32, i32) {
    %c0_i32 = arith.constant 0 : i32
    %c0_i32_0 = arith.constant 0 : i32
    %c0_i32_1 = arith.constant 0 : i32
    return %c0_i32, %c0_i32_0 : i32, i32
  }
  func.func @transform_2(%arg0: i32, %arg1: i32) -> (i32, i32, i32) {
    %c0_i32 = arith.constant 0 : i32
    %c0_i32_0 = arith.constant 0 : i32
    return %arg0, %c0_i32, %arg1 : i32, i32, i32
  }
  func.func @transform_3(%arg0: i32, %arg1: i32) -> (i32, i32, i32) {
    %c0_i32 = arith.constant 0 : i32
    %c0_i32_0 = arith.constant 0 : i32
    return %arg0, %c0_i32, %arg1 : i32, i32, i32
  }
}

module attributes {stable_mosaic.version = 11 : i64} {
  func.func @kernel(%arg0: i32, %arg1: i32, %arg2: memref<6x4xf32, #tpu.memory_space<vmem>>, %arg3: memref<6x1xf32, #tpu.memory_space<vmem>>, %arg4: memref<1x4x256xf32, #tpu.memory_space<vmem>>, %arg5: memref<1x6x256xf32, #tpu.memory_space<vmem>>) attributes {dimension_semantics = [#tpu.dimension_semantics<parallel>, #tpu.dimension_semantics<parallel>], iteration_bounds = array<i64: 2, 1>, scalar_prefetch = 0 : i64, scratch_operands = 0 : i64, tpu.core_type = #tpu.core_type<tc>, window_params = [{pipeline_mode = #tpu.pipeline_mode<synchronous>, transform_indices = @transform_0, window_bounds = array<i64: 6, 4>}, {pipeline_mode = #tpu.pipeline_mode<synchronous>, transform_indices = @transform_1, window_bounds = array<i64: 6, 1>}, {transform_indices = @transform_2, window_bounds = array<i64: 1, 4, 256>}, {transform_indices = @transform_3, window_bounds = array<i64: 1, 6, 256>}]} {
    %c0 = arith.constant 0 : index
    %c0_0 = arith.constant 0 : index
    %0 = vector.load %arg2[%c0, %c0_0] : memref<6x4xf32, #tpu.memory_space<vmem>>, vector<6x4xf32>
    %c0_1 = arith.constant 0 : index
    %c0_2 = arith.constant 0 : index
    %1 = vector.load %arg3[%c0_1, %c0_2] : memref<6x1xf32, #tpu.memory_space<vmem>>, vector<6x1xf32>
    %c0_3 = arith.constant 0 : index
    %c0_4 = arith.constant 0 : index
    %c0_5 = arith.constant 0 : index
    %2 = vector.load %arg4[%c0_3, %c0_4, %c0_5] : memref<1x4x256xf32, #tpu.memory_space<vmem>>, vector<1x4x256xf32>
    %3 = vector.shape_cast %2 : vector<1x4x256xf32> to vector<4x256xf32>
    %4 = vector.extract_strided_slice %3 {offsets = [0, 0], sizes = [1, 256], strides = [1, 1]} : vector<4x256xf32> to vector<1x256xf32>
    %5 = vector.extract_strided_slice %0 {offsets = [0, 0], sizes = [6, 1], strides = [1, 1]} : vector<6x4xf32> to vector<6x1xf32>
    %6 = vector.broadcast %4 : vector<1x256xf32> to vector<6x256xf32>
    %7 = vector.broadcast %5 : vector<6x1xf32> to vector<6x256xf32>
    %8 = arith.mulf %6, %7 : vector<6x256xf32>
    %9 = vector.extract_strided_slice %3 {offsets = [1, 0], sizes = [1, 256], strides = [1, 1]} : vector<4x256xf32> to vector<1x256xf32>
    %10 = vector.extract_strided_slice %0 {offsets = [0, 1], sizes = [6, 1], strides = [1, 1]} : vector<6x4xf32> to vector<6x1xf32>
    %11 = vector.broadcast %9 : vector<1x256xf32> to vector<6x256xf32>
    %12 = vector.broadcast %10 : vector<6x1xf32> to vector<6x256xf32>
    %13 = arith.mulf %11, %12 : vector<6x256xf32>
    %14 = arith.addf %8, %13 : vector<6x256xf32>
    %15 = vector.extract_strided_slice %3 {offsets = [2, 0], sizes = [1, 256], strides = [1, 1]} : vector<4x256xf32> to vector<1x256xf32>
    %16 = vector.extract_strided_slice %0 {offsets = [0, 2], sizes = [6, 1], strides = [1, 1]} : vector<6x4xf32> to vector<6x1xf32>
    %17 = vector.broadcast %15 : vector<1x256xf32> to vector<6x256xf32>
    %18 = vector.broadcast %16 : vector<6x1xf32> to vector<6x256xf32>
    %19 = arith.mulf %17, %18 : vector<6x256xf32>
    %20 = arith.addf %14, %19 : vector<6x256xf32>
    %21 = vector.extract_strided_slice %3 {offsets = [3, 0], sizes = [1, 256], strides = [1, 1]} : vector<4x256xf32> to vector<1x256xf32>
    %22 = vector.extract_strided_slice %0 {offsets = [0, 3], sizes = [6, 1], strides = [1, 1]} : vector<6x4xf32> to vector<6x1xf32>
    %23 = vector.broadcast %21 : vector<1x256xf32> to vector<6x256xf32>
    %24 = vector.broadcast %22 : vector<6x1xf32> to vector<6x256xf32>
    %25 = arith.mulf %23, %24 : vector<6x256xf32>
    %26 = arith.addf %20, %25 : vector<6x256xf32>
    %27 = vector.broadcast %1 : vector<6x1xf32> to vector<6x256xf32>
    %28 = arith.addf %26, %27 : vector<6x256xf32>
    %c0_6 = arith.constant 0 : index
    %c0_7 = arith.constant 0 : index
    %c0_8 = arith.constant 0 : index
    %29 = vector.load %arg5[%c0_6, %c0_7, %c0_8] : memref<1x6x256xf32, #tpu.memory_space<vmem>>, vector<1x6x256xf32>
    %30 = vector.shape_cast %29 : vector<1x6x256xf32> to vector<6x256xf32>
    %31 = vector.shape_cast %28 : vector<6x256xf32> to vector<1x6x256xf32>
    tpu.vector_store %arg5[%c0_6, %c0_7, %c0_8], %31 {strides = array<i32>} : memref<1x6x256xf32, #tpu.memory_space<vmem>>, vector<1x6x256xf32>,
    return
  }
  func.func @transform_0(%arg0: i32, %arg1: i32) -> (i32, i32) {
    %c0_i32 = arith.constant 0 : i32
    %c0_i32_0 = arith.constant 0 : i32
    %c0_i32_1 = arith.constant 0 : i32
    return %c0_i32, %c0_i32_0 : i32, i32
  }
  func.func @transform_1(%arg0: i32, %arg1: i32) -> (i32, i32) {
    %c0_i32 = arith.constant 0 : i32
    %c0_i32_0 = arith.constant 0 : i32
    %c0_i32_1 = arith.constant 0 : i32
    return %c0_i32, %c0_i32_0 : i32, i32
  }
  func.func @transform_2(%arg0: i32, %arg1: i32) -> (i32, i32, i32) {
    %c0_i32 = arith.constant 0 : i32
    %c0_i32_0 = arith.constant 0 : i32
    return %arg0, %c0_i32, %arg1 : i32, i32, i32
  }
  func.func @transform_3(%arg0: i32, %arg1: i32) -> (i32, i32, i32) {
    %c0_i32 = arith.constant 0 : i32
    %c0_i32_0 = arith.constant 0 : i32
    return %arg0, %c0_i32, %arg1 : i32, i32, i32
  }
}

</mosaic_0001>

<llo_original>
// kernel: tpu_custom_call.1
$region0: #{tpu_custom_call.1}
  #allocation0 [shape = 'u32[]', space=smem, size = 0x4, offset = 0x4, fixed_abs, tag = 'smem constant byte address 0x4 - core index']
  #allocation1 [shape = 'u32[72,128]{1,0:T(1,128)}', space=vmem, size = 0x9000, scoped, tag = 'internal scratch']
  %s0 = inlined_call_operand.hbm [shape: f32[4,8], index: 0, kind: input, shape index: {}]
  %s1 = inlined_call_operand.hbm [shape: f32[1,8], index: 1, kind: input, shape index: {}]
  %s2 = inlined_call_operand.hbm [shape: f32[2,4,256], index: 2, kind: input, shape index: {}]
  %s3 = inlined_call_operand.vmem [shape: f32[2,256,6], index: 3, kind: output, shape index: {}]
  %s4 = sld [smem:[#allocation0]]
  $region57: #{tpu_custom_call.1} parent=0
    _
  %s6 = ssub.s32 1, %s4
  %s7 = scalar_select 0, %s6, %s4
  $region1: #{tpu_custom_call.1} parent=0
    #allocation2 [shape = 'u8[2048]{0}', space=vmem, size = 0x800, scoped, tag = 'input window, operand 0, single buffered']
    #allocation3 [shape = 's32[2]{0}', space=sflag, size = 0x8, scoped, tag = 'scoped memory for tpu_custom_call.1']
    #allocation4 [shape = 'u8[512]{0}', space=vmem, size = 0x400, scoped, tag = 'input window, operand 1, single buffered']
    #allocation5 [shape = 's32[1]{0}', space=sflag, size = 0x4, scoped, tag = 'scoped memory for tpu_custom_call.1']
    #allocation6 [shape = 'u8[8192]{0}', space=vmem, size = 0x2000, scoped, tag = 'input window, operand 2']
    %8 = vsyncpa [#allocation3], 0
    %9 = vsyncpa [#allocation5], 0
    loop: start=0, step=1, limit=4
    $region2: #{tpu_custom_call.1} parent=1 // loop_pre_header
      _
    $region3: #{tpu_custom_call.1} parent=1 // loop_header
      %s11 = sphi 0, %s15
      %p12 = scmp.ge.s32.totalorder %s11, 4
      %s18 = sphi 0, %s30
      %s19 = sphi 0, %s26
      %s20 = sphi 0, %s18
      %s21 = sphi 0, %s19
      %s22 = sphi 0, %s20
      %s23 = sphi 0, %s21
      %s31 = sphi 0, %s31
      %s33 = sphi 0, %s31
      %s34 = sphi 0, %s33
      %s48 = sphi 0, %s34
      %s52 = sphi 0, %s52
      %s54 = sphi 0, %s52
      %s55 = sphi 0, %s54
      %s69 = sphi 0, %s55
      %s77 = sphi 0, %s79
      %s80 = sphi 0, %s77
      %s81 = sphi 0, %s80
      %s97 = sphi 0, %s81
      %s105 = sphi 0, %s107
      %s108 = sphi 0, %s105
      %s109 = sphi 0, %s108
      %s125 = sphi 0, %s109
    $region4: #{tpu_custom_call.1} parent=1 // loop_header_branch
      %14 = sbr.rel (%p12) target = $region8
    $region5: #{tpu_custom_call.1} parent=1 // loop_body
      %s16 = ssub.s32 %s11, 1
      %s17 = ssub.s32 %s11, 2
      %s24 = sadd.s32 1, %s19
      %p25 = scmp.ge.s32.totalorder %s24, 1
      %s26 = scalar_select %p25, 0, %s24
      %s27 = sadd.s32 1, %s18
      %s28 = scalar_select %p25, %s27, %s18
      %p29 = scmp.ge.s32.totalorder %s28, 2
      %s30 = scalar_select %p29, 0, %s28
      %s32 = sadd.s32 %s31, 1
      %p35 = scmp.eq.s32.totalorder %s11, 1
      %p36 = scmp.ne.s32.totalorder %s31, %s33
      %p37 = scmp.eq.s32.totalorder %s11, 0
      %p38 = por %p36, %p37
      %p39 = scmp.ne.s32.totalorder %s31, %s33
      %p40 = scmp.eq.s32.totalorder %s16, 1
      %p41 = por %p39, %p40
      %p42 = scmp.ne.s32.totalorder %s33, %s34
      %p43 = scmp.eq.s32.totalorder %s16, 0
      %p44 = por %p42, %p43
      %p45 = scmp.ne.s32.totalorder %s33, %s34
      %p46 = scmp.eq.s32.totalorder %s17, 1
      %p47 = por %p45, %p46
      %p49 = scmp.ne.s32.totalorder %s34, %s48
      %p50 = scmp.eq.s32.totalorder %s17, 0
      %p51 = por %p49, %p50
      %s53 = sadd.s32 %s52, 1
      %p56 = scmp.eq.s32.totalorder %s11, 1
      %p57 = scmp.ne.s32.totalorder %s52, %s54
      %p58 = scmp.eq.s32.totalorder %s11, 0
      %p59 = por %p57, %p58
      %p60 = scmp.ne.s32.totalorder %s52, %s54
      %p61 = scmp.eq.s32.totalorder %s16, 1
      %p62 = por %p60, %p61
      %p63 = scmp.ne.s32.totalorder %s54, %s55
      %p64 = scmp.eq.s32.totalorder %s16, 0
      %p65 = por %p63, %p64
      %p66 = scmp.ne.s32.totalorder %s54, %s55
      %p67 = scmp.eq.s32.totalorder %s17, 1
      %p68 = por %p66, %p67
      %p70 = scmp.ne.s32.totalorder %s55, %s69
      %p71 = scmp.eq.s32.totalorder %s17, 0
      %p72 = por %p70, %p71
      %s73 = ssub.s32 %s18, %s30
      %s74 = ssub.s32 %s19, %s26
      %s75 = sor.u32 %s73, %s74
      %p76 = scmp.eq.s32.totalorder %s75, 0
      %s78 = sadd.s32 %s77, 1
      %s79 = scalar_select %p76, %s77, %s78
      %p82 = pneg %p76
      %p83 = scmp.eq.s32.totalorder %s11, 1
      %p84 = por %p82, %p83
      %p85 = scmp.ne.s32.totalorder %s77, %s80
      %p86 = scmp.eq.s32.totalorder %s11, 0
      %p87 = por %p85, %p86
      %p88 = scmp.ne.s32.totalorder %s77, %s80
      %p89 = scmp.eq.s32.totalorder %s16, 1
      %p90 = por %p88, %p89
      %p91 = scmp.ne.s32.totalorder %s80, %s81
      %p92 = scmp.eq.s32.totalorder %s16, 0
      %p93 = por %p91, %p92
      %p94 = scmp.ne.s32.totalorder %s80, %s81
      %p95 = scmp.eq.s32.totalorder %s17, 1
      %p96 = por %p94, %p95
      %p98 = scmp.ne.s32.totalorder %s81, %s97
      %p99 = scmp.eq.s32.totalorder %s17, 0
      %p100 = por %p98, %p99
      %s101 = ssub.s32 %s18, %s30
      %s102 = ssub.s32 %s19, %s26
      %s103 = sor.u32 %s101, %s102
      %p104 = scmp.eq.s32.totalorder %s103, 0
      %s106 = sadd.s32 %s105, 1
      %s107 = scalar_select %p104, %s105, %s106
      %p110 = pneg %p104
      %p111 = scmp.eq.s32.totalorder %s11, 1
      %p112 = por %p110, %p111
      %p113 = scmp.ne.s32.totalorder %s105, %s108
      %p114 = scmp.eq.s32.totalorder %s11, 0
      %p115 = por %p113, %p114
      %p116 = scmp.ne.s32.totalorder %s105, %s108
      %p117 = scmp.eq.s32.totalorder %s16, 1
      %p118 = por %p116, %p117
      %p119 = scmp.ne.s32.totalorder %s108, %s109
      %p120 = scmp.eq.s32.totalorder %s16, 0
      %p121 = por %p119, %p120
      %p122 = scmp.ne.s32.totalorder %s108, %s109
      %p123 = scmp.eq.s32.totalorder %s17, 1
      %p124 = por %p122, %p123
      %p126 = scmp.ne.s32.totalorder %s109, %s125
      %p127 = scmp.eq.s32.totalorder %s17, 0
      %p128 = por %p126, %p127
      %p129 = scmp.le.s32.totalorder 1, %s11
      %p130 = scmp.lt.s32.totalorder %s11, 3
      %p131 = pnand %p129, %p130
      %p132 = pneg %p131
      // Predicated region
      $region9: #{tpu_custom_call.1} parent=5 // pred_check
        _
      $region10: #{tpu_custom_call.1} parent=5 // pred_check_branch
        %134 = sbr.rel (%p131) target = $region12
      $region11: #{tpu_custom_call.1} parent=5 // pred_region
        %s135 = ssub.s32 %s11, 1
        // Predicated region
        $region13: #{tpu_custom_call.1} parent=11 // pred_check
          %p136 = pneg %p44
        $region14: #{tpu_custom_call.1} parent=11 // pred_check_branch
          %138 = sbr.rel (%p136) target = $region16
        $region15: #{tpu_custom_call.1} parent=11 // pred_region
          %140 = vsyncadd [#allocation3], 0
          %s142 = sshll.u32 %s0, 4
          %s143 = int_to_ptr.hbm [resolvable:$true] %s142
          %s144 = sshll.u32 [#allocation2], 4
          %s145 = int_to_ptr.vmem [resolvable:$true] %s144
          %147 = dma.hbm_to_vmem [thread:$0]  %s143, 64, %s145, [#allocation3]
        $region16: #{tpu_custom_call.1} parent=11 // pred_fallthru
          _
        // Predicated region
        $region17: #{tpu_custom_call.1} parent=11 // pred_check
          %p148 = pneg %p65
        $region18: #{tpu_custom_call.1} parent=11 // pred_check_branch
          %150 = sbr.rel (%p148) target = $region20
        $region19: #{tpu_custom_call.1} parent=11 // pred_region
          %152 = vsyncadd [#allocation5], 0
          %s154 = sshll.u32 %s1, 4
          %s155 = int_to_ptr.hbm [resolvable:$true] %s154
          %s156 = sshll.u32 [#allocation4], 4
          %s157 = int_to_ptr.vmem [resolvable:$true] %s156
          %159 = dma.hbm_to_vmem [thread:$0]  %s155, 16, %s157, [#allocation5]
        $region20: #{tpu_custom_call.1} parent=11 // pred_fallthru
          _
      $region12: #{tpu_custom_call.1} parent=5 // pred_fallthru
        _
      %p160 = scmp.lt.s32.totalorder %s11, 2
      // Predicated region
      $region21: #{tpu_custom_call.1} parent=5 // pred_check
        %p161 = pneg %p160
      $region22: #{tpu_custom_call.1} parent=5 // pred_check_branch
        %163 = sbr.rel (%p161) target = $region24
      $region23: #{tpu_custom_call.1} parent=5 // pred_region
        // Predicated region
        $region25: #{tpu_custom_call.1} parent=23 // pred_check
          %p164 = pneg %p87
        $region26: #{tpu_custom_call.1} parent=23 // pred_check_branch
          %166 = sbr.rel (%p164) target = $region28
        $region27: #{tpu_custom_call.1} parent=23 // pred_region
          %s167 = sand.u32 %s11, 1
          %s168 = scalar_lea.sflag [#allocation3], %s167
          %s169 = sand.u32 %s77, 1
          %s170 = smul.addr %s169, 8
          %s171 = scalar_lea.vmem [#allocation6], %s170
          %s172 = smul.u32 2, %s19
          %174 = vsyncadd %s168, 0
          %s175 = smul.addr %s18, 2
          %s176 = sadd.s32 %s172, %s175
          %s177 = smul.addr %s176, 4
          %s178 = scalar_lea.hbm %s2, %s177
          %s180 = sshll.u32 %s178, 4
          %s181 = int_to_ptr.hbm [resolvable:$true] %s180
          %s182 = sshll.u32 %s171, 4
          %s183 = int_to_ptr.vmem [resolvable:$true] %s182
          %185 = dma.hbm_to_vmem [thread:$0]  %s181, 128, %s183, %s168
        $region28: #{tpu_custom_call.1} parent=23 // pred_fallthru
          _
      $region24: #{tpu_custom_call.1} parent=5 // pred_fallthru
        _
      %p186 = scmp.le.s32.totalorder 1, %s11
      %p187 = scmp.lt.s32.totalorder %s11, 3
      %p188 = pnand %p186, %p187
      %p189 = pneg %p188
      // Predicated region
      $region29: #{tpu_custom_call.1} parent=5 // pred_check
        _
      $region30: #{tpu_custom_call.1} parent=5 // pred_check_branch
        %191 = sbr.rel (%p188) target = $region32
      $region31: #{tpu_custom_call.1} parent=5 // pred_region
        %s192 = ssub.s32 %s11, 1
        // Predicated region
        $region33: #{tpu_custom_call.1} parent=31 // pred_check
          %p193 = pneg %p44
        $region34: #{tpu_custom_call.1} parent=31 // pred_check_branch
          %195 = sbr.rel (%p193) target = $region36
        $region35: #{tpu_custom_call.1} parent=31 // pred_region
          %197 = dma.done [#allocation3], 64
        $region36: #{tpu_custom_call.1} parent=31 // pred_fallthru
          _
        // Predicated region
        $region37: #{tpu_custom_call.1} parent=31 // pred_check
          %p198 = pneg %p65
        $region38: #{tpu_custom_call.1} parent=31 // pred_check_branch
          %200 = sbr.rel (%p198) target = $region40
        $region39: #{tpu_custom_call.1} parent=31 // pred_region
          %202 = dma.done [#allocation5], 16
        $region40: #{tpu_custom_call.1} parent=31 // pred_fallthru
          _
        %s203 = sand.u32 %s16, 1
        %s204 = scalar_lea.sflag [#allocation3], %s203
        %s205 = sand.u32 %s80, 1
        %s206 = smul.addr %s205, 8
        %s207 = scalar_lea.vmem [#allocation6], %s206
        // Predicated region
        $region41: #{tpu_custom_call.1} parent=31 // pred_check
          %p208 = pneg %p93
        $region42: #{tpu_custom_call.1} parent=31 // pred_check_branch
          %210 = sbr.rel (%p208) target = $region44
        $region43: #{tpu_custom_call.1} parent=31 // pred_region
          %212 = dma.done %s204, 128
        $region44: #{tpu_custom_call.1} parent=31 // pred_fallthru
          _
        %p213 = pneg %p44
        %p214 = pneg %p41
        %p215 = pneg %p65
        %p216 = pneg %p62
        %s217 = sand.u32 %s16, 1
        %s218 = scalar_lea.sflag [#allocation3], %s217
        %s219 = sand.u32 %s80, 1
        %s220 = smul.addr %s219, 8
        %s221 = scalar_lea.vmem [#allocation6], %s220
        %p222 = pneg %p93
        %p223 = pneg %p90
        %p224 = pneg %p121
        %p225 = pneg %p118
        %p226 = scmp.lt.s32.totalorder %s20, 1
        %s227 = scalar_select %p226, %s20, 1
        %p228 = scmp.lt.s32.totalorder %s21, 0
        %s229 = scalar_select %p228, %s21, 0
        %s230 = smul.addr %s227, 32
        %s231 = sadd.s32 %s229, %s230
        %s232 = smul.addr %s231, 8
        %s233 = scalar_lea.vmem %s3, %s232
        %s234 = smul.u32 2, %s21
        %p235 = scmp.lt.s32.totalorder %s20, 1
        %s236 = scalar_select %p235, %s20, 1
        %p237 = scmp.lt.s32.totalorder %s21, 0
        %s238 = scalar_select %p237, %s21, 0
        %s239 = smul.addr %s236, 32
        %s240 = sadd.s32 %s238, %s239
        %s241 = smul.addr %s240, 8
        %s242 = scalar_lea.vmem %s3, %s241
        %v243 = vld [vmem:[#allocation2] sm:$0xf]
        %v244 = vld [vmem:[#allocation4] sm:$0x1]
        %v245 = vld [vmem:[%s207] sm:$0xff]
        %v247 = vperm.slane %v244, 0
        %250 = vst [vmem:[#allocation1] ss:$2 sm:$0xff] %v245
        %v251 = vld.sshfl [vmem:[#allocation1] sm:$0xff pattern:$0x75316420]
        %v252 = vld.sshfl [vmem:[#allocation1 + $0x8] sm:$0xff pattern:$0x75316420]
        %255 = vxpose.xlu0.b32.start [1/16] %v251, 128
        %256 = vxpose.xlu0.b32.cont [2/16] 0.0, 128
        %257 = vxpose.xlu0.b32.cont [3/16] 0.0, 128
        %258 = vxpose.xlu0.b32.cont [4/16] 0.0, 128
        %259 = vxpose.xlu0.b32.cont [5/16] 0.0, 128
        %260 = vxpose.xlu0.b32.cont [6/16] 0.0, 128
        %261 = vxpose.xlu0.b32.cont [7/16] 0.0, 128
        %262 = vxpose.xlu0.b32.cont [8/16] 0.0, 128
        %263 = vxpose.xlu0.b32.cont [9/16] 0.0, 128
        %264 = vxpose.xlu0.b32.cont [10/16] 0.0, 128
        %265 = vxpose.xlu0.b32.cont [11/16] 0.0, 128
        %266 = vxpose.xlu0.b32.cont [12/16] 0.0, 128
        %267 = vxpose.xlu0.b32.cont [13/16] 0.0, 128
        %268 = vxpose.xlu0.b32.cont [14/16] 0.0, 128
        %269 = vxpose.xlu0.b32.cont [15/16] 0.0, 128
        %270 = vxpose.xlu0.b32.end [16/16] 0.0, 128
        %v271 = vpop.trf.xlu0
        %v272 = vpop.trf.xlu0
        %v273 = vpop.trf.xlu0
        %v274 = vpop.trf.xlu0
        %v275 = vpop.trf.xlu0
        %v276 = vpop.trf.xlu0
        %v277 = vpop.trf.xlu0
        %v278 = vpop.trf.xlu0
        %v279 = vpop.trf.xlu0
        %v280 = vpop.trf.xlu0
        %v281 = vpop.trf.xlu0
        %v282 = vpop.trf.xlu0
        %v283 = vpop.trf.xlu0
        %v284 = vpop.trf.xlu0
        %v285 = vpop.trf.xlu0
        %v286 = vpop.trf.xlu0
        %287 = vxpose.xlu0.b32.start [1/16] %v252, 128
        %288 = vxpose.xlu0.b32.cont [2/16] 0.0, 128
        %289 = vxpose.xlu0.b32.cont [3/16] 0.0, 128
        %290 = vxpose.xlu0.b32.cont [4/16] 0.0, 128
        %291 = vxpose.xlu0.b32.cont [5/16] 0.0, 128
        %292 = vxpose.xlu0.b32.cont [6/16] 0.0, 128
        %293 = vxpose.xlu0.b32.cont [7/16] 0.0, 128
        %294 = vxpose.xlu0.b32.cont [8/16] 0.0, 128
        %295 = vxpose.xlu0.b32.cont [9/16] 0.0, 128
        %296 = vxpose.xlu0.b32.cont [10/16] 0.0, 128
        %297 = vxpose.xlu0.b32.cont [11/16] 0.0, 128
        %298 = vxpose.xlu0.b32.cont [12/16] 0.0, 128
        %299 = vxpose.xlu0.b32.cont [13/16] 0.0, 128
        %300 = vxpose.xlu0.b32.cont [14/16] 0.0, 128
        %301 = vxpose.xlu0.b32.cont [15/16] 0.0, 128
        %302 = vxpose.xlu0.b32.end [16/16] 0.0, 128
        %v303 = vpop.trf.xlu0
        %v304 = vpop.trf.xlu0
        %v305 = vpop.trf.xlu0
        %v306 = vpop.trf.xlu0
        %v307 = vpop.trf.xlu0
        %v308 = vpop.trf.xlu0
        %v309 = vpop.trf.xlu0
        %v310 = vpop.trf.xlu0
        %v311 = vpop.trf.xlu0
        %v312 = vpop.trf.xlu0
        %v313 = vpop.trf.xlu0
        %v314 = vpop.trf.xlu0
        %v315 = vpop.trf.xlu0
        %v316 = vpop.trf.xlu0
        %v317 = vpop.trf.xlu0
        %v318 = vpop.trf.xlu0
        %vm319 = vcmask 31744
        %v321 = vsel %vm319, %v271, 0
        %v324 = vsel %vm319, %v272, 0
        %v327 = vsel %vm319, %v273, 0
        %v330 = vsel %vm319, %v274, 0
        %v333 = vsel %vm319, %v275, 0
        %v336 = vsel %vm319, %v276, 0
        %v339 = vsel %vm319, %v277, 0
        %v342 = vsel %vm319, %v278, 0
        %v345 = vsel %vm319, %v279, 0
        %v348 = vsel %vm319, %v280, 0
        %v351 = vsel %vm319, %v281, 0
        %v354 = vsel %vm319, %v282, 0
        %v357 = vsel %vm319, %v283, 0
        %v360 = vsel %vm319, %v284, 0
        %v363 = vsel %vm319, %v285, 0
        %v366 = vsel %vm319, %v286, 0
        %v369 = vsel %vm319, %v303, 0
        %v372 = vsel %vm319, %v304, 0
        %v375 = vsel %vm319, %v305, 0
        %v378 = vsel %vm319, %v306, 0
        %v381 = vsel %vm319, %v307, 0
        %v384 = vsel %vm319, %v308, 0
        %v387 = vsel %vm319, %v309, 0
        %v390 = vsel %vm319, %v310, 0
        %v393 = vsel %vm319, %v311, 0
        %v396 = vsel %vm319, %v312, 0
        %v399 = vsel %vm319, %v313, 0
        %v402 = vsel %vm319, %v314, 0
        %v405 = vsel %vm319, %v315, 0
        %v408 = vsel %vm319, %v316, 0
        %v411 = vsel %vm319, %v317, 0
        %v414 = vsel %vm319, %v318, 0
        %vm416 = vcmask 1043456
        %v418 = vsel %vm416, %v243, 0
        %420 = vmatpush.msra.mxu0 0.0
        %421 = vmatpush.msra.mxu0 0.0
        %422 = vmatpush.msra.mxu0 0.0
        %423 = vmatpush.msra.mxu0 0.0
        %424 = vmatpush.msra.mxu0 0.0
        %425 = vmatpush.msra.mxu0 0.0
        %426 = vmatpush.msra.mxu0 0.0
        %427 = vmatpush.msra.mxu0 0.0
        %428 = vmatpush.msra.mxu0 0.0
        %429 = vmatpush.msra.mxu0 0.0
        %430 = vmatpush.msra.mxu0 0.0
        %431 = vmatpush.msra.mxu0 0.0
        %432 = vmatpush.msra.mxu0 0.0
        %433 = vmatpush.msra.mxu0 0.0
        %434 = vmatpush.msra.mxu0 0.0
        %435 = vmatpush.msra.mxu0 %v418
        %436 = vmatmul.f32.gmra.mxu0 %v321
        %v437 = vpop.f32.mrf.mxu0
        %v438 = vadd.f32 %v247, %v437
        %439 = vmatmul.f32.gmra.mxu0 %v324
        %v440 = vpop.f32.mrf.mxu0
        %v441 = vadd.f32 %v247, %v440
        %442 = vmatmul.f32.gmra.mxu0 %v327
        %v443 = vpop.f32.mrf.mxu0
        %v444 = vadd.f32 %v247, %v443
        %445 = vmatmul.f32.gmra.mxu0 %v330
        %v446 = vpop.f32.mrf.mxu0
        %v447 = vadd.f32 %v247, %v446
        %448 = vmatmul.f32.gmra.mxu0 %v333
        %v449 = vpop.f32.mrf.mxu0
        %v450 = vadd.f32 %v247, %v449
        %451 = vmatmul.f32.gmra.mxu0 %v336
        %v452 = vpop.f32.mrf.mxu0
        %v453 = vadd.f32 %v247, %v452
        %454 = vmatmul.f32.gmra.mxu0 %v339
        %v455 = vpop.f32.mrf.mxu0
        %v456 = vadd.f32 %v247, %v455
        %457 = vmatmul.f32.gmra.mxu0 %v342
        %v458 = vpop.f32.mrf.mxu0
        %v459 = vadd.f32 %v247, %v458
        %460 = vmatmul.f32.gmra.mxu0 %v345
        %v461 = vpop.f32.mrf.mxu0
        %v462 = vadd.f32 %v247, %v461
        %463 = vmatmul.f32.gmra.mxu0 %v348
        %v464 = vpop.f32.mrf.mxu0
        %v465 = vadd.f32 %v247, %v464
        %466 = vmatmul.f32.gmra.mxu0 %v351
        %v467 = vpop.f32.mrf.mxu0
        %v468 = vadd.f32 %v247, %v467
        %469 = vmatmul.f32.gmra.mxu0 %v354
        %v470 = vpop.f32.mrf.mxu0
        %v471 = vadd.f32 %v247, %v470
        %472 = vmatmul.f32.gmra.mxu0 %v357
        %v473 = vpop.f32.mrf.mxu0
        %v474 = vadd.f32 %v247, %v473
        %475 = vmatmul.f32.gmra.mxu0 %v360
        %v476 = vpop.f32.mrf.mxu0
        %v477 = vadd.f32 %v247, %v476
        %478 = vmatmul.f32.gmra.mxu0 %v363
        %v479 = vpop.f32.mrf.mxu0
        %v480 = vadd.f32 %v247, %v479
        %481 = vmatmul.f32.gmra.mxu0 %v366
        %v482 = vpop.f32.mrf.mxu0
        %v483 = vadd.f32 %v247, %v482
        %484 = vmatmul.f32.gmra.mxu0 %v369
        %v485 = vpop.f32.mrf.mxu0
        %v486 = vadd.f32 %v247, %v485
        %487 = vmatmul.f32.gmra.mxu0 %v372
        %v488 = vpop.f32.mrf.mxu0
        %v489 = vadd.f32 %v247, %v488
        %490 = vmatmul.f32.gmra.mxu0 %v375
        %v491 = vpop.f32.mrf.mxu0
        %v492 = vadd.f32 %v247, %v491
        %493 = vmatmul.f32.gmra.mxu0 %v378
        %v494 = vpop.f32.mrf.mxu0
        %v495 = vadd.f32 %v247, %v494
        %496 = vmatmul.f32.gmra.mxu0 %v381
        %v497 = vpop.f32.mrf.mxu0
        %v498 = vadd.f32 %v247, %v497
        %499 = vmatmul.f32.gmra.mxu0 %v384
        %v500 = vpop.f32.mrf.mxu0
        %v501 = vadd.f32 %v247, %v500
        %502 = vmatmul.f32.gmra.mxu0 %v387
        %v503 = vpop.f32.mrf.mxu0
        %v504 = vadd.f32 %v247, %v503
        %505 = vmatmul.f32.gmra.mxu0 %v390
        %v506 = vpop.f32.mrf.mxu0
        %v507 = vadd.f32 %v247, %v506
        %508 = vmatmul.f32.gmra.mxu0 %v393
        %v509 = vpop.f32.mrf.mxu0
        %v510 = vadd.f32 %v247, %v509
        %511 = vmatmul.f32.gmra.mxu0 %v396
        %v512 = vpop.f32.mrf.mxu0
        %v513 = vadd.f32 %v247, %v512
        %514 = vmatmul.f32.gmra.mxu0 %v399
        %v515 = vpop.f32.mrf.mxu0
        %v516 = vadd.f32 %v247, %v515
        %517 = vmatmul.f32.gmra.mxu0 %v402
        %v518 = vpop.f32.mrf.mxu0
        %v519 = vadd.f32 %v247, %v518
        %520 = vmatmul.f32.gmra.mxu0 %v405
        %v521 = vpop.f32.mrf.mxu0
        %v522 = vadd.f32 %v247, %v521
        %523 = vmatmul.f32.gmra.mxu0 %v408
        %v524 = vpop.f32.mrf.mxu0
        %v525 = vadd.f32 %v247, %v524
        %526 = vmatmul.f32.gmra.mxu0 %v411
        %v527 = vpop.f32.mrf.mxu0
        %v528 = vadd.f32 %v247, %v527
        %529 = vmatmul.f32.gmra.mxu0 %v414
        %v530 = vpop.f32.mrf.mxu0
        %v531 = vadd.f32 %v247, %v530
        %532 = vdwg.mxu0
        %vm533 = vcmask 48128
        %534 = vst.msk [vmem:[%s242] sm:$0xff] %vm533, %v438
        %535 = vst.msk [vmem:[%s242 + $0x8] sm:$0xff] %vm533, %v441
        %536 = vst.msk [vmem:[%s242 + $0x10] sm:$0xff] %vm533, %v444
        %537 = vst.msk [vmem:[%s242 + $0x18] sm:$0xff] %vm533, %v447
        %538 = vst.msk [vmem:[%s242 + $0x20] sm:$0xff] %vm533, %v450
        %539 = vst.msk [vmem:[%s242 + $0x28] sm:$0xff] %vm533, %v453
        %540 = vst.msk [vmem:[%s242 + $0x30] sm:$0xff] %vm533, %v456
        %541 = vst.msk [vmem:[%s242 + $0x38] sm:$0xff] %vm533, %v459
        %542 = vst.msk [vmem:[%s242 + $0x40] sm:$0xff] %vm533, %v462
        %543 = vst.msk [vmem:[%s242 + $0x48] sm:$0xff] %vm533, %v465
        %544 = vst.msk [vmem:[%s242 + $0x50] sm:$0xff] %vm533, %v468
        %545 = vst.msk [vmem:[%s242 + $0x58] sm:$0xff] %vm533, %v471
        %546 = vst.msk [vmem:[%s242 + $0x60] sm:$0xff] %vm533, %v474
        %547 = vst.msk [vmem:[%s242 + $0x68] sm:$0xff] %vm533, %v477
        %548 = vst.msk [vmem:[%s242 + $0x70] sm:$0xff] %vm533, %v480
        %549 = vst.msk [vmem:[%s242 + $0x78] sm:$0xff] %vm533, %v483
        %550 = vst.msk [vmem:[%s242 + $0x80] sm:$0xff] %vm533, %v486
        %551 = vst.msk [vmem:[%s242 + $0x88] sm:$0xff] %vm533, %v489
        %552 = vst.msk [vmem:[%s242 + $0x90] sm:$0xff] %vm533, %v492
        %553 = vst.msk [vmem:[%s242 + $0x98] sm:$0xff] %vm533, %v495
        %554 = vst.msk [vmem:[%s242 + $0xa0] sm:$0xff] %vm533, %v498
        %555 = vst.msk [vmem:[%s242 + $0xa8] sm:$0xff] %vm533, %v501
        %556 = vst.msk [vmem:[%s242 + $0xb0] sm:$0xff] %vm533, %v504
        %557 = vst.msk [vmem:[%s242 + $0xb8] sm:$0xff] %vm533, %v507
        %558 = vst.msk [vmem:[%s242 + $0xc0] sm:$0xff] %vm533, %v510
        %559 = vst.msk [vmem:[%s242 + $0xc8] sm:$0xff] %vm533, %v513
        %560 = vst.msk [vmem:[%s242 + $0xd0] sm:$0xff] %vm533, %v516
        %561 = vst.msk [vmem:[%s242 + $0xd8] sm:$0xff] %vm533, %v519
        %562 = vst.msk [vmem:[%s242 + $0xe0] sm:$0xff] %vm533, %v522
        %563 = vst.msk [vmem:[%s242 + $0xe8] sm:$0xff] %vm533, %v525
        %564 = vst.msk [vmem:[%s242 + $0xf0] sm:$0xff] %vm533, %v528
        %565 = vst.msk [vmem:[%s242 + $0xf8] sm:$0xff] %vm533, %v531
        %p566 = scmp.lt.s32.totalorder %s20, 1
        %s567 = scalar_select %p566, %s20, 1
        %p568 = scmp.lt.s32.totalorder %s21, 0
        %s569 = scalar_select %p568, %s21, 0
        %s570 = smul.addr %s567, 32
        %s571 = sadd.s32 %s569, %s570
        %s572 = smul.addr %s571, 8
        %s573 = scalar_lea.vmem %s3, %s572
        // Predicated region
        $region45: #{tpu_custom_call.1} parent=31 // pred_check
          %p574 = pneg %p118
        $region46: #{tpu_custom_call.1} parent=31 // pred_check_branch
          %576 = sbr.rel (%p574) target = $region48
        $region47: #{tpu_custom_call.1} parent=31 // pred_region
          _
        $region48: #{tpu_custom_call.1} parent=31 // pred_fallthru
          _
      $region32: #{tpu_custom_call.1} parent=5 // pred_fallthru
        _
      %p577 = scmp.le.s32.totalorder 2, %s11
      // Predicated region
      $region49: #{tpu_custom_call.1} parent=5 // pred_check
        %p578 = pneg %p577
      $region50: #{tpu_custom_call.1} parent=5 // pred_check_branch
        %580 = sbr.rel (%p578) target = $region52
      $region51: #{tpu_custom_call.1} parent=5 // pred_region
        %s581 = ssub.s32 %s11, 2
        // Predicated region
        $region53: #{tpu_custom_call.1} parent=51 // pred_check
          %p582 = pneg %p124
        $region54: #{tpu_custom_call.1} parent=51 // pred_check_branch
          %584 = sbr.rel (%p582) target = $region56
        $region55: #{tpu_custom_call.1} parent=51 // pred_region
          %p585 = scmp.lt.s32.totalorder %s22, 1
          %s586 = scalar_select %p585, %s22, 1
          %p587 = scmp.lt.s32.totalorder %s23, 0
          %s588 = scalar_select %p587, %s23, 0
          %s589 = smul.addr %s586, 32
          %s590 = sadd.s32 %s588, %s589
          %s591 = smul.addr %s590, 8
          %s592 = scalar_lea.vmem %s3, %s591
        $region56: #{tpu_custom_call.1} parent=51 // pred_fallthru
          _
      $region52: #{tpu_custom_call.1} parent=5 // pred_fallthru
        _
    $region6: #{tpu_custom_call.1} parent=1 // loop_footer
      %s15 = sadd.s32 1, %s11
    $region7: #{tpu_custom_call.1} parent=1 // loop_footer_branch
      %10 = sbr.rel target = $region3
    $region8: #{tpu_custom_call.1} parent=1 // loop_exit
      _
    %593 = vsyncpa [#allocation3], 1
    %s594 = scalar_lea.sflag [#allocation3], 1
    %595 = vsyncpa %s594, 1
    %596 = vsyncpa [#allocation5], 1

// kernel: tpu_custom_call.1
$region0: #{tpu_custom_call.1}
  #allocation0 [shape = 'u32[]', space=smem, size = 0x4, offset = 0x4, fixed_abs, tag = 'smem constant byte address 0x4 - core index']
  #allocation1 [shape = 'u32[72,128]{1,0:T(1,128)}', space=vmem, size = 0x9000, scoped, tag = 'internal scratch']
  %s0 = inlined_call_operand.vmem [shape: f32[6,4], index: 0, kind: input, shape index: {}]
  %s1 = inlined_call_operand.vmem [shape: f32[6,1], index: 1, kind: input, shape index: {}]
  %s2 = inlined_call_operand.vmem [shape: f32[2,4,256], index: 2, kind: input, shape index: {}]
  %s3 = inlined_call_operand.vmem [shape: f32[2,6,256], index: 3, kind: output, shape index: {}]
  %s4 = sld [smem:[#allocation0]]
  $region45: #{tpu_custom_call.1} parent=0
    _
  %s6 = ssub.s32 1, %s4
  %s7 = scalar_select 0, %s6, %s4
  loop: start=0, step=1, limit=4
  $region2: #{tpu_custom_call.1} parent=0 // loop_pre_header
    _
  $region3: #{tpu_custom_call.1} parent=0 // loop_header
    %s9 = sphi 0, %s13
    %p10 = scmp.ge.s32.totalorder %s9, 4
    %s16 = sphi 0, %s28
    %s17 = sphi 0, %s24
    %s18 = sphi 0, %s16
    %s19 = sphi 0, %s17
    %s20 = sphi 0, %s18
    %s21 = sphi 0, %s19
    %s29 = sphi 0, %s29
    %s31 = sphi 0, %s29
    %s32 = sphi 0, %s31
    %s46 = sphi 0, %s32
    %s50 = sphi 0, %s50
    %s52 = sphi 0, %s50
    %s53 = sphi 0, %s52
    %s67 = sphi 0, %s53
    %s75 = sphi 0, %s77
    %s78 = sphi 0, %s75
    %s79 = sphi 0, %s78
    %s95 = sphi 0, %s79
    %s103 = sphi 0, %s105
    %s106 = sphi 0, %s103
    %s107 = sphi 0, %s106
    %s123 = sphi 0, %s107
  $region4: #{tpu_custom_call.1} parent=0 // loop_header_branch
    %12 = sbr.rel (%p10) target = $region8
  $region5: #{tpu_custom_call.1} parent=0 // loop_body
    %s14 = ssub.s32 %s9, 1
    %s15 = ssub.s32 %s9, 2
    %s22 = sadd.s32 1, %s17
    %p23 = scmp.ge.s32.totalorder %s22, 1
    %s24 = scalar_select %p23, 0, %s22
    %s25 = sadd.s32 1, %s16
    %s26 = scalar_select %p23, %s25, %s16
    %p27 = scmp.ge.s32.totalorder %s26, 2
    %s28 = scalar_select %p27, 0, %s26
    %s30 = sadd.s32 %s29, 1
    %p33 = scmp.eq.s32.totalorder %s9, 1
    %p34 = scmp.ne.s32.totalorder %s29, %s31
    %p35 = scmp.eq.s32.totalorder %s9, 0
    %p36 = por %p34, %p35
    %p37 = scmp.ne.s32.totalorder %s29, %s31
    %p38 = scmp.eq.s32.totalorder %s14, 1
    %p39 = por %p37, %p38
    %p40 = scmp.ne.s32.totalorder %s31, %s32
    %p41 = scmp.eq.s32.totalorder %s14, 0
    %p42 = por %p40, %p41
    %p43 = scmp.ne.s32.totalorder %s31, %s32
    %p44 = scmp.eq.s32.totalorder %s15, 1
    %p45 = por %p43, %p44
    %p47 = scmp.ne.s32.totalorder %s32, %s46
    %p48 = scmp.eq.s32.totalorder %s15, 0
    %p49 = por %p47, %p48
    %s51 = sadd.s32 %s50, 1
    %p54 = scmp.eq.s32.totalorder %s9, 1
    %p55 = scmp.ne.s32.totalorder %s50, %s52
    %p56 = scmp.eq.s32.totalorder %s9, 0
    %p57 = por %p55, %p56
    %p58 = scmp.ne.s32.totalorder %s50, %s52
    %p59 = scmp.eq.s32.totalorder %s14, 1
    %p60 = por %p58, %p59
    %p61 = scmp.ne.s32.totalorder %s52, %s53
    %p62 = scmp.eq.s32.totalorder %s14, 0
    %p63 = por %p61, %p62
    %p64 = scmp.ne.s32.totalorder %s52, %s53
    %p65 = scmp.eq.s32.totalorder %s15, 1
    %p66 = por %p64, %p65
    %p68 = scmp.ne.s32.totalorder %s53, %s67
    %p69 = scmp.eq.s32.totalorder %s15, 0
    %p70 = por %p68, %p69
    %s71 = ssub.s32 %s16, %s28
    %s72 = ssub.s32 %s17, %s24
    %s73 = sor.u32 %s71, %s72
    %p74 = scmp.eq.s32.totalorder %s73, 0
    %s76 = sadd.s32 %s75, 1
    %s77 = scalar_select %p74, %s75, %s76
    %p80 = pneg %p74
    %p81 = scmp.eq.s32.totalorder %s9, 1
    %p82 = por %p80, %p81
    %p83 = scmp.ne.s32.totalorder %s75, %s78
    %p84 = scmp.eq.s32.totalorder %s9, 0
    %p85 = por %p83, %p84
    %p86 = scmp.ne.s32.totalorder %s75, %s78
    %p87 = scmp.eq.s32.totalorder %s14, 1
    %p88 = por %p86, %p87
    %p89 = scmp.ne.s32.totalorder %s78, %s79
    %p90 = scmp.eq.s32.totalorder %s14, 0
    %p91 = por %p89, %p90
    %p92 = scmp.ne.s32.totalorder %s78, %s79
    %p93 = scmp.eq.s32.totalorder %s15, 1
    %p94 = por %p92, %p93
    %p96 = scmp.ne.s32.totalorder %s79, %s95
    %p97 = scmp.eq.s32.totalorder %s15, 0
    %p98 = por %p96, %p97
    %s99 = ssub.s32 %s16, %s28
    %s100 = ssub.s32 %s17, %s24
    %s101 = sor.u32 %s99, %s100
    %p102 = scmp.eq.s32.totalorder %s101, 0
    %s104 = sadd.s32 %s103, 1
    %s105 = scalar_select %p102, %s103, %s104
    %p108 = pneg %p102
    %p109 = scmp.eq.s32.totalorder %s9, 1
    %p110 = por %p108, %p109
    %p111 = scmp.ne.s32.totalorder %s103, %s106
    %p112 = scmp.eq.s32.totalorder %s9, 0
    %p113 = por %p111, %p112
    %p114 = scmp.ne.s32.totalorder %s103, %s106
    %p115 = scmp.eq.s32.totalorder %s14, 1
    %p116 = por %p114, %p115
    %p117 = scmp.ne.s32.totalorder %s106, %s107
    %p118 = scmp.eq.s32.totalorder %s14, 0
    %p119 = por %p117, %p118
    %p120 = scmp.ne.s32.totalorder %s106, %s107
    %p121 = scmp.eq.s32.totalorder %s15, 1
    %p122 = por %p120, %p121
    %p124 = scmp.ne.s32.totalorder %s107, %s123
    %p125 = scmp.eq.s32.totalorder %s15, 0
    %p126 = por %p124, %p125
    %p127 = scmp.le.s32.totalorder 1, %s9
    %p128 = scmp.lt.s32.totalorder %s9, 3
    %p129 = pnand %p127, %p128
    %p130 = pneg %p129
    // Predicated region
    $region9: #{tpu_custom_call.1} parent=5 // pred_check
      _
    $region10: #{tpu_custom_call.1} parent=5 // pred_check_branch
      %132 = sbr.rel (%p129) target = $region12
    $region11: #{tpu_custom_call.1} parent=5 // pred_region
      %s133 = ssub.s32 %s9, 1
      // Predicated region
      $region13: #{tpu_custom_call.1} parent=11 // pred_check
        %p134 = pneg %p42
      $region14: #{tpu_custom_call.1} parent=11 // pred_check_branch
        %136 = sbr.rel (%p134) target = $region16
      $region15: #{tpu_custom_call.1} parent=11 // pred_region
        _
      $region16: #{tpu_custom_call.1} parent=11 // pred_fallthru
        _
      // Predicated region
      $region17: #{tpu_custom_call.1} parent=11 // pred_check
        %p137 = pneg %p63
      $region18: #{tpu_custom_call.1} parent=11 // pred_check_branch
        %139 = sbr.rel (%p137) target = $region20
      $region19: #{tpu_custom_call.1} parent=11 // pred_region
        _
      $region20: #{tpu_custom_call.1} parent=11 // pred_fallthru
        _
    $region12: #{tpu_custom_call.1} parent=5 // pred_fallthru
      _
    %p140 = scmp.lt.s32.totalorder %s9, 2
    // Predicated region
    $region21: #{tpu_custom_call.1} parent=5 // pred_check
      %p141 = pneg %p140
    $region22: #{tpu_custom_call.1} parent=5 // pred_check_branch
      %143 = sbr.rel (%p141) target = $region24
    $region23: #{tpu_custom_call.1} parent=5 // pred_region
      // Predicated region
      $region25: #{tpu_custom_call.1} parent=23 // pred_check
        %p144 = pneg %p85
      $region26: #{tpu_custom_call.1} parent=23 // pred_check_branch
        %146 = sbr.rel (%p144) target = $region28
      $region27: #{tpu_custom_call.1} parent=23 // pred_region
        %s147 = smul.u32 2, %s17
        %p148 = scmp.lt.s32.totalorder %s16, 1
        %s149 = scalar_select %p148, %s16, 1
        %p150 = scmp.lt.s32.totalorder %s147, 1
        %s151 = scalar_select %p150, %s147, 1
        %s152 = smul.addr %s149, 2
        %s153 = sadd.s32 %s151, %s152
        %s154 = smul.addr %s153, 4
        %s155 = scalar_lea.vmem %s2, %s154
        %s156 = smul.u32 2, %s17
      $region28: #{tpu_custom_call.1} parent=23 // pred_fallthru
        _
    $region24: #{tpu_custom_call.1} parent=5 // pred_fallthru
      _
    %p157 = scmp.le.s32.totalorder 1, %s9
    %p158 = scmp.lt.s32.totalorder %s9, 3
    %p159 = pnand %p157, %p158
    %p160 = pneg %p159
    // Predicated region
    $region29: #{tpu_custom_call.1} parent=5 // pred_check
      _
    $region30: #{tpu_custom_call.1} parent=5 // pred_check_branch
      %162 = sbr.rel (%p159) target = $region32
    $region31: #{tpu_custom_call.1} parent=5 // pred_region
      %s163 = ssub.s32 %s9, 1
      %p164 = pneg %p42
      %p165 = pneg %p39
      %p166 = pneg %p63
      %p167 = pneg %p60
      %s168 = smul.u32 2, %s19
      %p169 = scmp.lt.s32.totalorder %s18, 1
      %s170 = scalar_select %p169, %s18, 1
      %p171 = scmp.lt.s32.totalorder %s168, 1
      %s172 = scalar_select %p171, %s168, 1
      %s173 = smul.addr %s170, 2
      %s174 = sadd.s32 %s172, %s173
      %s175 = smul.addr %s174, 4
      %s176 = scalar_lea.vmem %s2, %s175
      %p177 = pneg %p91
      %p178 = pneg %p88
      %p179 = pneg %p119
      %p180 = pneg %p116
      %s181 = smul.u32 2, %s19
      %p182 = scmp.lt.s32.totalorder %s18, 1
      %s183 = scalar_select %p182, %s18, 1
      %p184 = scmp.lt.s32.totalorder %s181, 1
      %s185 = scalar_select %p184, %s181, 1
      %s186 = smul.addr %s183, 2
      %s187 = sadd.s32 %s185, %s186
      %s188 = smul.addr %s187, 8
      %s189 = scalar_lea.vmem %s3, %s188
      %s190 = smul.u32 2, %s19
      %p191 = scmp.lt.s32.totalorder %s18, 1
      %s192 = scalar_select %p191, %s18, 1
      %p193 = scmp.lt.s32.totalorder %s190, 1
      %s194 = scalar_select %p193, %s190, 1
      %s195 = smul.addr %s192, 2
      %s196 = sadd.s32 %s194, %s195
      %s197 = smul.addr %s196, 4
      %s198 = scalar_lea.vmem %s2, %s197
      %s199 = smul.u32 2, %s19
      %s200 = smul.u32 2, %s19
      %p201 = scmp.lt.s32.totalorder %s18, 1
      %s202 = scalar_select %p201, %s18, 1
      %p203 = scmp.lt.s32.totalorder %s200, 1
      %s204 = scalar_select %p203, %s200, 1
      %s205 = smul.addr %s202, 2
      %s206 = sadd.s32 %s204, %s205
      %s207 = smul.addr %s206, 8
      %s208 = scalar_lea.vmem %s3, %s207
      %s209 = smul.u32 2, %s19
      %v210 = vld [vmem:[%s0] sm:$0x3f]
      %v211 = vld [vmem:[%s1] sm:$0x3f]
      %v212 = vld [vmem:[%s198] sm:$0xff]
      %v214 = vperm.slane %v212, 0
      %v215 = vperm.slane %v212, 4
      %v218 = vperm.slane %v214, 0
      %v219 = vperm.slane %v215, 0
      %221 = vset.pattern.permute.xlu0 0
      %222 = vperm.xlu0 %221, %v210
      %v223 = vpop.permute.xlu0 %222
      %v225 = vmul.f32 %v218, %v223
      %v226 = vmul.f32 %v219, %v223
      %v227 = vperm.slane %v212, 1
      %v228 = vperm.slane %v212, 5
      %v231 = vperm.slane %v227, 1
      %v232 = vperm.slane %v228, 1
      %233 = vset.pattern.permute.xlu0 1
      %234 = vperm.xlu0 %233, %v210
      %v235 = vpop.permute.xlu0 %234
      %v237 = vmul.f32 %v231, %v235
      %v238 = vmul.f32 %v232, %v235
      %v239 = vadd.f32 %v225, %v237
      %v240 = vadd.f32 %v226, %v238
      %v241 = vperm.slane %v212, 2
      %v242 = vperm.slane %v212, 6
      %v245 = vperm.slane %v241, 2
      %v246 = vperm.slane %v242, 2
      %247 = vset.pattern.permute.xlu0 2
      %248 = vperm.xlu0 %247, %v210
      %v249 = vpop.permute.xlu0 %248
      %v251 = vmul.f32 %v245, %v249
      %v252 = vmul.f32 %v246, %v249
      %v253 = vadd.f32 %v239, %v251
      %v254 = vadd.f32 %v240, %v252
      %v255 = vperm.slane %v212, 3
      %v256 = vperm.slane %v212, 7
      %v259 = vperm.slane %v255, 3
      %v260 = vperm.slane %v256, 3
      %261 = vset.pattern.permute.xlu0 3
      %262 = vperm.xlu0 %261, %v210
      %v263 = vpop.permute.xlu0 %262
      %v265 = vmul.f32 %v259, %v263
      %v266 = vmul.f32 %v260, %v263
      %v267 = vadd.f32 %v253, %v265
      %v268 = vadd.f32 %v254, %v266
      %270 = vset.pattern.permute.xlu0 0
      %271 = vperm.xlu0 %270, %v211
      %v272 = vpop.permute.xlu0 %271
      %v274 = vadd.f32 %v267, %v272
      %v275 = vadd.f32 %v268, %v272
      %276 = vst [vmem:[%s208] sm:$0x3f] %v274
      %277 = vst [vmem:[%s208 + $0x8] sm:$0x3f] %v275
      %s278 = smul.u32 2, %s19
      %p279 = scmp.lt.s32.totalorder %s18, 1
      %s280 = scalar_select %p279, %s18, 1
      %p281 = scmp.lt.s32.totalorder %s278, 1
      %s282 = scalar_select %p281, %s278, 1
      %s283 = smul.addr %s280, 2
      %s284 = sadd.s32 %s282, %s283
      %s285 = smul.addr %s284, 8
      %s286 = scalar_lea.vmem %s3, %s285
      // Predicated region
      $region33: #{tpu_custom_call.1} parent=31 // pred_check
        %p287 = pneg %p116
      $region34: #{tpu_custom_call.1} parent=31 // pred_check_branch
        %289 = sbr.rel (%p287) target = $region36
      $region35: #{tpu_custom_call.1} parent=31 // pred_region
        %s290 = smul.u32 2, %s19
      $region36: #{tpu_custom_call.1} parent=31 // pred_fallthru
        _
    $region32: #{tpu_custom_call.1} parent=5 // pred_fallthru
      _
    %p291 = scmp.le.s32.totalorder 2, %s9
    // Predicated region
    $region37: #{tpu_custom_call.1} parent=5 // pred_check
      %p292 = pneg %p291
    $region38: #{tpu_custom_call.1} parent=5 // pred_check_branch
      %294 = sbr.rel (%p292) target = $region40
    $region39: #{tpu_custom_call.1} parent=5 // pred_region
      %s295 = ssub.s32 %s9, 2
      // Predicated region
      $region41: #{tpu_custom_call.1} parent=39 // pred_check
        %p296 = pneg %p122
      $region42: #{tpu_custom_call.1} parent=39 // pred_check_branch
        %298 = sbr.rel (%p296) target = $region44
      $region43: #{tpu_custom_call.1} parent=39 // pred_region
        %s299 = smul.u32 2, %s21
        %p300 = scmp.lt.s32.totalorder %s20, 1
        %s301 = scalar_select %p300, %s20, 1
        %p302 = scmp.lt.s32.totalorder %s299, 1
        %s303 = scalar_select %p302, %s299, 1
        %s304 = smul.addr %s301, 2
        %s305 = sadd.s32 %s303, %s304
        %s306 = smul.addr %s305, 8
        %s307 = scalar_lea.vmem %s3, %s306
      $region44: #{tpu_custom_call.1} parent=39 // pred_fallthru
        _
    $region40: #{tpu_custom_call.1} parent=5 // pred_fallthru
      _
  $region6: #{tpu_custom_call.1} parent=0 // loop_footer
    %s13 = sadd.s32 1, %s9
  $region7: #{tpu_custom_call.1} parent=0 // loop_footer_branch
    %8 = sbr.rel target = $region3
  $region8: #{tpu_custom_call.1} parent=0 // loop_exit
    _

</llo_original>
